<compile_context>
chip_gen: v7x
topology: tpu7x:2x2x1
jax: 0.10.0
libtpu: 0.0.40
codegen_flags: <defaults>
</compile_context>

<pallas_src>
import functools

import jax
import jax.numpy as jnp
from jax.experimental import pallas as pl
from jax.experimental.pallas import tpu as pltpu


# --------------------------------------------------------------------------
# Kernels
# --------------------------------------------------------------------------
def _kernel_f32_out(x_ref, w_ref, b_ref, o_ref):
    """f32 output: accumulate directly into the resident output block."""
    k = pl.program_id(2)

    @pl.when(k == 0)
    def _init():
        o_ref[...] = jnp.zeros_like(o_ref)

    o_ref[...] += jnp.dot(x_ref[...], w_ref[...],
                          preferred_element_type=jnp.float32)

    @pl.when(k == pl.num_programs(2) - 1)
    def _epilogue():
        o_ref[...] = jnp.maximum(o_ref[...] + b_ref[...].astype(jnp.float32),
                                 0.0)


def _kernel_acc(x_ref, w_ref, b_ref, o_ref, acc_ref):
    """Narrow output dtype: f32 VMEM accumulator, cast in the epilogue."""
    k = pl.program_id(2)

    @pl.when(k == 0)
    def _init():
        acc_ref[...] = jnp.zeros_like(acc_ref)

    acc_ref[...] += jnp.dot(x_ref[...], w_ref[...],
                            preferred_element_type=jnp.float32)

    @pl.when(k == pl.num_programs(2) - 1)
    def _epilogue():
        out = acc_ref[...] + b_ref[...].astype(jnp.float32)
        o_ref[...] = jnp.maximum(out, 0.0).astype(o_ref.dtype)


# --------------------------------------------------------------------------
# Tiling helpers
# --------------------------------------------------------------------------
def _round_up(x, m):
    return ((x + m - 1) // m) * m


def _pick_tile(extent_rounded, default, gran):
    """Largest multiple of `gran` <= default that divides extent_rounded."""
    t = min(default, extent_rounded)
    t = max((t // gran) * gran, gran)
    while extent_rounded % t != 0:
        t -= gran
    return t


def _split_for_parallelism(tm, tn, m_pad, n_pad):
    """Ensure >=2 blocks on the parallel M/N axes when possible (v7x: 2 TCs)."""
    if (m_pad // tm) * (n_pad // tn) >= 2:
        return tm, tn
    if tn >= 256 and tn % 256 == 0:       # halved tile stays a multiple of 128
        return tm, tn // 2
    if tm >= 16 and tm % 16 == 0:         # halved tile stays a multiple of 8
        return tm // 2, tn
    return tm, tn


# --------------------------------------------------------------------------
# Wrapper
# --------------------------------------------------------------------------
@functools.partial(jax.jit, static_argnames=("tm", "tn", "tk", "compute_dtype"))
def my_linear(x, weight, bias, *, tm=1024, tn=1024, tk=512,
              compute_dtype=jnp.bfloat16):
    """Equivalent of MyLinear.forward: relu(x @ weight + bias).

    compute_dtype is the MXU operand dtype (default bf16, f32 accumulation).
    For repeated calls, pre-cast weight/bias to compute_dtype outside this
    function so the cast is not a per-call HBM pass.
    """
    batch, in_units = x.shape
    in_units_w, units = weight.shape
    assert in_units == in_units_w
    assert bias.shape == (units,)

    out_dtype = x.dtype
    if compute_dtype is not None:
        if x.dtype != compute_dtype:
            x = x.astype(compute_dtype)
        if weight.dtype != compute_dtype:
            weight = weight.astype(compute_dtype)

    # Round extents only to hardware granularity (8 sublane / 128 lane), then
    # pick tiles as divisors of the rounded extents -> padding waste is capped
    # at the granularity, not at a whole tile.
    m_pad = _round_up(batch, 8)
    n_pad = _round_up(units, 128)
    k_pad = _round_up(in_units, 128)

    tm = _pick_tile(m_pad, tm, 8)
    tn = _pick_tile(n_pad, tn, 128)
    tk = _pick_tile(k_pad, tk, 128)
    tm, tn = _split_for_parallelism(tm, tn, m_pad, n_pad)

    # Zero padding is exact: padded K contributes 0 to the dot, padded
    # rows/cols are sliced away before returning.  Skip no-op pads.
    x_p = x
    if m_pad != batch or k_pad != in_units:
        x_p = jnp.pad(x, ((0, m_pad - batch), (0, k_pad - in_units)))
    w_p = weight
    if k_pad != in_units or n_pad != units:
        w_p = jnp.pad(weight, ((0, k_pad - in_units), (0, n_pad - units)))
    b_p = bias if n_pad == units else jnp.pad(bias, (0, n_pad - units))
    b_p = b_p.reshape(1, n_pad)

    grid = (m_pad // tm, n_pad // tn, k_pad // tk)

    # f32 outputs accumulate straight into the resident output block; only
    # narrow output dtypes need the f32 VMEM scratch.
    use_scratch = jnp.dtype(out_dtype) != jnp.dtype(jnp.float32)
    kernel = _kernel_acc if use_scratch else _kernel_f32_out
    scratch_shapes = [pltpu.VMEM((tm, tn), jnp.float32)] if use_scratch else []

    isz = lambda a: jnp.dtype(a.dtype).itemsize
    out_isz = jnp.dtype(out_dtype).itemsize

    # VMEM budget for this tiling: double-buffered X/W inputs + double-buffered
    # output block (+ scratch).  Sized with headroom, capped below v7x's
    # physical 64 MiB-per-core ceiling... using 96 MiB only when tiles demand it.
    vmem_needed = (2 * (tm * tk + tk * tn) * isz(x_p)
                   + 2 * tm * tn * out_isz
                   + 2 * tn * isz(b_p)
                   + (tm * tn * 4 if use_scratch else 0))
    vmem_limit = int(min(max(32 << 20, vmem_needed * 3 // 2), 96 << 20))

    # Count re-reads: X streamed once per N-block column, W once per M-block row.
    cost = pl.CostEstimate(
        flops=2 * m_pad * n_pad * k_pad,
        transcendentals=0,
        bytes_accessed=(x_p.size * isz(x_p) * (n_pad // tn)
                        + w_p.size * isz(w_p) * (m_pad // tm)
                        + b_p.size * isz(b_p) * (m_pad // tm)
                        + m_pad * n_pad * out_isz),
    )

    out_padded = pl.pallas_call(
        kernel,
        out_shape=jax.ShapeDtypeStruct((m_pad, n_pad), out_dtype),
        grid=grid,
        in_specs=[
            pl.BlockSpec((tm, tk), lambda i, j, k: (i, k)),   # X tile
            pl.BlockSpec((tk, tn), lambda i, j, k: (k, j)),   # W tile
            pl.BlockSpec((1, tn), lambda i, j, k: (0, j)),    # bias (N-only)
        ],
        out_specs=pl.BlockSpec((tm, tn), lambda i, j, k: (i, j)),
        scratch_shapes=scratch_shapes,
        compiler_params=pltpu.CompilerParams(
            dimension_semantics=("parallel", "parallel", "arbitrary"),
            vmem_limit_bytes=vmem_limit),
        cost_estimate=cost,
    )(x_p, w_p, b_p)

    return out_padded[:batch, :units]


# --------------------------------------------------------------------------
# Self-test
# --------------------------------------------------------------------------
if __name__ == "__main__":
    key = jax.random.PRNGKey(0)
    kx, kw, kb = jax.random.split(key, 3)

    # Small shapes consistent with MyLinear (same as a torch.randn init).
    batch, in_units, units = 8, 32, 16
    x = jax.random.normal(kx, (batch, in_units), dtype=jnp.float32)
    weight = jax.random.normal(kw, (in_units, units), dtype=jnp.float32)
    bias = jax.random.normal(kb, (units,), dtype=jnp.float32)

    # Default bf16-MXU path: compare against a bf16-operand / f32-accum reference.
    out = my_linear(x, weight, bias)
    jax.block_until_ready(out)
    ref_bf16 = jnp.maximum(
        jnp.dot(x.astype(jnp.bfloat16), weight.astype(jnp.bfloat16),
                preferred_element_type=jnp.float32) + bias, 0.0)
    assert out.shape == (batch, units)
    assert out.dtype == x.dtype
    assert jnp.allclose(out, ref_bf16, atol=1e-2, rtol=1e-2)

    # Full-f32 MXU path: tight tolerance against the f32 reference.
    out_f32 = my_linear(x, weight, bias, compute_dtype=jnp.float32)
    jax.block_until_ready(out_f32)
    ref_f32 = jnp.maximum(x @ weight + bias, 0.0)
    assert jnp.allclose(out_f32, ref_f32, atol=2e-5, rtol=2e-5)

    # Larger shapes exercising multi-block parallel grid, divisor tile picking
    # (K=640 -> tk=128, no full-tile padding) and the N-padding path.
    b2, k2, n2 = 384, 640, 384
    kx2, kw2, kb2 = jax.random.split(jax.random.PRNGKey(1), 3)
    x2 = jax.random.normal(kx2, (b2, k2), dtype=jnp.float32)
    w2 = jax.random.normal(kw2, (k2, n2), dtype=jnp.float32)
    bi2 = jax.random.normal(kb2, (n2,), dtype=jnp.float32)

    out2 = my_linear(x2, w2, bi2)
    jax.block_until_ready(out2)
    ref2_bf16 = jnp.maximum(
        jnp.dot(x2.astype(jnp.bfloat16), w2.astype(jnp.bfloat16),
                preferred_element_type=jnp.float32) + bi2, 0.0)
    assert out2.shape == (b2, n2)
    assert jnp.allclose(out2, ref2_bf16, atol=5e-2, rtol=5e-2)

    out2_f32 = my_linear(x2, w2, bi2, compute_dtype=jnp.float32)
    jax.block_until_ready(out2_f32)
    ref2_f32 = jnp.maximum(x2 @ w2 + bi2, 0.0)
    assert jnp.allclose(out2_f32, ref2_f32, atol=1e-4, rtol=1e-4)

    print("KERNEL_OK")
</pallas_src>

<mosaic_0001>
module attributes {stable_mosaic.version = 11 : i64} {
  func.func @_kernel_f32_out(%arg0: i32, %arg1: i32, %arg2: i32, %arg3: memref<8x128xbf16, #tpu.memory_space<vmem>>, %arg4: memref<128x128xbf16, #tpu.memory_space<vmem>>, %arg5: memref<1x128xf32, #tpu.memory_space<vmem>>, %arg6: memref<8x128xf32, #tpu.memory_space<vmem>>) attributes {dimension_semantics = [#tpu.dimension_semantics<parallel>, #tpu.dimension_semantics<parallel>, #tpu.dimension_semantics<arbitrary>], iteration_bounds = array<i64: 1, 1, 1>, scalar_prefetch = 0 : i64, scratch_operands = 0 : i64, tpu.core_type = #tpu.core_type<tc>, window_params = [{transform_indices = @transform_0, window_bounds = array<i64: 8, 128>}, {transform_indices = @transform_1, window_bounds = array<i64: 128, 128>}, {transform_indices = @transform_2, window_bounds = array<i64: 1, 128>}, {transform_indices = @transform_3, window_bounds = array<i64: 8, 128>}]} {
    %c0_i32 = arith.constant 0 : i32
    %0 = arith.cmpi eq, %arg2, %c0_i32 : i32
    %1 = arith.extui %0 : i1 to i32
    %c0_i32_0 = arith.constant 0 : i32
    %2 = arith.cmpi ne, %1, %c0_i32_0 : i32
    scf.if %2 {
      %cst_10 = arith.constant 0.000000e+00 : f32
      %12 = vector.broadcast %cst_10 : f32 to vector<8x128xf32>
      %c0_11 = arith.constant 0 : index
      %c0_12 = arith.constant 0 : index
      %13 = vector.load %arg6[%c0_11, %c0_12] : memref<8x128xf32, #tpu.memory_space<vmem>>, vector<8x128xf32>
      tpu.vector_store %arg6[%c0_11, %c0_12], %12 {strides = array<i32>} : memref<8x128xf32, #tpu.memory_space<vmem>>, vector<8x128xf32>,
    } else {
    }
    %c0 = arith.constant 0 : index
    %c0_1 = arith.constant 0 : index
    %3 = vector.load %arg6[%c0, %c0_1] : memref<8x128xf32, #tpu.memory_space<vmem>>, vector<8x128xf32>
    %c0_2 = arith.constant 0 : index
    %c0_3 = arith.constant 0 : index
    %4 = vector.load %arg3[%c0_2, %c0_3] : memref<8x128xbf16, #tpu.memory_space<vmem>>, vector<8x128xbf16>
    %c0_4 = arith.constant 0 : index
    %c0_5 = arith.constant 0 : index
    %5 = vector.load %arg4[%c0_4, %c0_5] : memref<128x128xbf16, #tpu.memory_space<vmem>>, vector<128x128xbf16>
    %cst = arith.constant dense<0.000000e+00> : vector<8x128xf32>
    %6 = tpu.matmul %4, %5, %cst {dimension_numbers = #tpu.dot_dimension_numbers<[1], [0], [0], [1], [0, 0, 1, 1], [], []>} : vector<8x128xbf16>, vector<128x128xbf16>, vector<8x128xf32> -> vector<8x128xf32>
    %7 = arith.addf %3, %6 : vector<8x128xf32>
    %c0_6 = arith.constant 0 : index
    %c0_7 = arith.constant 0 : index
    %8 = vector.load %arg6[%c0_6, %c0_7] : memref<8x128xf32, #tpu.memory_space<vmem>>, vector<8x128xf32>
    tpu.vector_store %arg6[%c0_6, %c0_7], %7 {strides = array<i32>} : memref<8x128xf32, #tpu.memory_space<vmem>>, vector<8x128xf32>,
    %c0_i32_8 = arith.constant 0 : i32
    %9 = arith.cmpi eq, %arg2, %c0_i32_8 : i32
    %10 = arith.extui %9 : i1 to i32
    %c0_i32_9 = arith.constant 0 : i32
    %11 = arith.cmpi ne, %10, %c0_i32_9 : i32
    scf.if %11 {
      %c0_10 = arith.constant 0 : index
      %c0_11 = arith.constant 0 : index
      %12 = vector.load %arg6[%c0_10, %c0_11] : memref<8x128xf32, #tpu.memory_space<vmem>>, vector<8x128xf32>
      %c0_12 = arith.constant 0 : index
      %c0_13 = arith.constant 0 : index
      %13 = vector.load %arg5[%c0_12, %c0_13] : memref<1x128xf32, #tpu.memory_space<vmem>>, vector<1x128xf32>
      %14 = vector.broadcast %13 : vector<1x128xf32> to vector<8x128xf32>
      %15 = arith.addf %12, %14 : vector<8x128xf32>
      %cst_14 = arith.constant 0.000000e+00 : f32
      %16 = vector.broadcast %cst_14 : f32 to vector<8x128xf32>
      %17 = arith.maximumf %15, %16 : vector<8x128xf32>
      %c0_15 = arith.constant 0 : index
      %c0_16 = arith.constant 0 : index
      %18 = vector.load %arg6[%c0_15, %c0_16] : memref<8x128xf32, #tpu.memory_space<vmem>>, vector<8x128xf32>
      tpu.vector_store %arg6[%c0_15, %c0_16], %17 {strides = array<i32>} : memref<8x128xf32, #tpu.memory_space<vmem>>, vector<8x128xf32>,
    } else {
    }
    return
  }
  func.func @transform_0(%arg0: i32, %arg1: i32, %arg2: i32) -> (i32, i32) {
    %c0_i32 = arith.constant 0 : i32
    return %arg0, %arg2 : i32, i32
  }
  func.func @transform_1(%arg0: i32, %arg1: i32, %arg2: i32) -> (i32, i32) {
    %c0_i32 = arith.constant 0 : i32
    return %arg2, %arg1 : i32, i32
  }
  func.func @transform_2(%arg0: i32, %arg1: i32, %arg2: i32) -> (i32, i32) {
    %c0_i32 = arith.constant 0 : i32
    %c0_i32_0 = arith.constant 0 : i32
    return %c0_i32, %arg1 : i32, i32
  }
  func.func @transform_3(%arg0: i32, %arg1: i32, %arg2: i32) -> (i32, i32) {
    %c0_i32 = arith.constant 0 : i32
    return %arg0, %arg1 : i32, i32
  }
}

</mosaic_0001>

<llo_original>
// kernel: my_linear.1
$region0: #{my_linear.1}
  #allocation0 [shape = 'u32[]', space=smem, size = 0x4, offset = 0x4, fixed_abs, tag = 'smem constant byte address 0x4 - core index']
  #allocation1 [shape = 'u32[144,128]{1,0:T(1,128)}', space=vmem, size = 0x12000, scoped, tag = 'internal scratch']
  %s0 = inlined_call_operand.vmem [shape: bf16[8,128], index: 0, kind: input, shape index: {}]
  %s1 = inlined_call_operand.vmem [shape: bf16[128,128], index: 1, kind: input, shape index: {}]
  %s2 = inlined_call_operand.vmem [shape: f32[1,128], index: 2, kind: input, shape index: {}]
  %s3 = inlined_call_operand.hbm [shape: f32[8,128], index: 3, kind: output, shape index: {}]
  %s4 = sld [smem:[#allocation0]]
  $region30: #{my_linear.1} parent=0
    _
  %s6 = ssub.s32 1, %s4
  %s7 = scalar_select 0, %s6, %s4
  $region1: #{my_linear.1} parent=0
    #allocation2 [shape = 'u8[4096]{0}', space=vmem, size = 0x1000, scoped, tag = 'output window, operand 0, single buffered']
    #allocation3 [shape = 's32[1]{0}', space=sflag, size = 0x4, scoped, tag = 'scoped memory for my_linear.1']
    %8 = vsyncpa [#allocation3], 0
    // Predicated region
    $region2: #{my_linear.1} parent=1 // pred_check
      _
    $region3: #{my_linear.1} parent=1 // pred_check_branch
      %10 = sbr.rel (0) target = $region5
    $region4: #{my_linear.1} parent=1 // pred_region
      _
    $region5: #{my_linear.1} parent=1 // pred_fallthru
      _
    // Predicated region
    $region6: #{my_linear.1} parent=1 // pred_check
      _
    $region7: #{my_linear.1} parent=1 // pred_check_branch
      %12 = sbr.rel (0) target = $region9
    $region8: #{my_linear.1} parent=1 // pred_region
      _
    $region9: #{my_linear.1} parent=1 // pred_fallthru
      _
    // Predicated region
    $region10: #{my_linear.1} parent=1 // pred_check
      _
    $region11: #{my_linear.1} parent=1 // pred_check_branch
      %14 = sbr.rel (0) target = $region13
    $region12: #{my_linear.1} parent=1 // pred_region
      _
    $region13: #{my_linear.1} parent=1 // pred_fallthru
      _
    %p16 = scmp.eq.s32.totalorder 0, 0
    // Predicated region
    $region14: #{my_linear.1} parent=1 // pred_check
      %p17 = pneg %p16
    $region15: #{my_linear.1} parent=1 // pred_check_branch
      %19 = sbr.rel (%p17) target = $region17
    $region16: #{my_linear.1} parent=1 // pred_region
      %20 = vst [vmem:[#allocation2] sm:$0xff] 0.0
    $region17: #{my_linear.1} parent=1 // pred_fallthru
      _
    %v21 = vld [vmem:[#allocation2] sm:$0xff]
    %v22 = vld [vmem:[%s0] sm:$0xf]
    %v23 = vld [vmem:[%s1] sm:$0xf]
    %v24 = vld [vmem:[%s1 + $0x4] sm:$0xf]
    %v25 = vld [vmem:[%s1 + $0x8] sm:$0xf]
    %v26 = vld [vmem:[%s1 + $0xc] sm:$0xf]
    %v27 = vld [vmem:[%s1 + $0x10] sm:$0xf]
    %v28 = vld [vmem:[%s1 + $0x14] sm:$0xf]
    %v29 = vld [vmem:[%s1 + $0x18] sm:$0xf]
    %v30 = vld [vmem:[%s1 + $0x1c] sm:$0xf]
    %v31 = vld [vmem:[%s1 + $0x20] sm:$0xf]
    %v32 = vld [vmem:[%s1 + $0x24] sm:$0xf]
    %v33 = vld [vmem:[%s1 + $0x28] sm:$0xf]
    %v34 = vld [vmem:[%s1 + $0x2c] sm:$0xf]
    %v35 = vld [vmem:[%s1 + $0x30] sm:$0xf]
    %v36 = vld [vmem:[%s1 + $0x34] sm:$0xf]
    %v37 = vld [vmem:[%s1 + $0x38] sm:$0xf]
    %v38 = vld [vmem:[%s1 + $0x3c] sm:$0xf]
    %v55 = vunpack.c.l.b16 %v23
    %v56 = vunpack.c.l.b16 %v24
    %v57 = vunpack.c.l.b16 %v25
    %v58 = vunpack.c.l.b16 %v26
    %v59 = vunpack.c.l.b16 %v27
    %v60 = vunpack.c.l.b16 %v28
    %v61 = vunpack.c.l.b16 %v29
    %v62 = vunpack.c.l.b16 %v30
    %v63 = vunpack.c.l.b16 %v31
    %v64 = vunpack.c.l.b16 %v32
    %v65 = vunpack.c.l.b16 %v33
    %v66 = vunpack.c.l.b16 %v34
    %v67 = vunpack.c.l.b16 %v35
    %v68 = vunpack.c.l.b16 %v36
    %v69 = vunpack.c.l.b16 %v37
    %v70 = vunpack.c.l.b16 %v38
    %v71 = vpack.c.b16 %v56, %v55
    %v72 = vpack.c.b16 %v58, %v57
    %v73 = vpack.c.b16 %v60, %v59
    %v74 = vpack.c.b16 %v62, %v61
    %v75 = vpack.c.b16 %v64, %v63
    %v76 = vpack.c.b16 %v66, %v65
    %v77 = vpack.c.b16 %v68, %v67
    %v78 = vpack.c.b16 %v70, %v69
    %87 = vmatprep.subr.bf16.mxu0 0
    %88 = vmatpush1.bf16.msra.mxu0 %v71
    %89 = vmatprep.subr.bf16.mxu0 0
    %90 = vmatpush1.bf16.msra.mxu0 %v72
    %91 = vmatprep.subr.bf16.mxu0 0
    %92 = vmatpush1.bf16.msra.mxu0 %v73
    %93 = vmatprep.subr.bf16.mxu0 0
    %94 = vmatpush1.bf16.msra.mxu0 %v74
    %95 = vmatprep.subr.bf16.mxu0 0
    %96 = vmatpush1.bf16.msra.mxu0 %v75
    %97 = vmatprep.subr.bf16.mxu0 0
    %98 = vmatpush1.bf16.msra.mxu0 %v76
    %99 = vmatprep.subr.bf16.mxu0 0
    %100 = vmatpush1.bf16.msra.mxu0 %v77
    %101 = vmatprep.subr.bf16.mxu0 0
    %102 = vmatpush1.bf16.msra.mxu0 %v78
    %103 = vmatprep.subr.bf16.mxu0 0
    %104 = vmatpush1.bf16.msra.mxu0 0
    %105 = vmatprep.subr.bf16.mxu0 0
    %106 = vmatpush1.bf16.msra.mxu0 0
    %107 = vmatprep.subr.bf16.mxu0 0
    %108 = vmatpush1.bf16.msra.mxu0 0
    %109 = vmatprep.subr.bf16.mxu0 0
    %110 = vmatpush1.bf16.msra.mxu0 0
    %111 = vmatprep.subr.bf16.mxu0 0
    %112 = vmatpush1.bf16.msra.mxu0 0
    %113 = vmatprep.subr.bf16.mxu0 0
    %114 = vmatpush1.bf16.msra.mxu0 0
    %115 = vmatprep.subr.bf16.mxu0 0
    %116 = vmatpush1.bf16.msra.mxu0 0
    %117 = vmatprep.subr.bf16.mxu0 0
    %118 = vmatpush1.bf16.msra.mxu0 0
    %119 = vmatprep.mubr.bf16.mxu0 0
    %120 = vmatmul.mubr.bf16.gmra.mrb[0].mxu0 %v22
    %v121 = vpop.f32.mrb[0].mxu0
    %v122 = vadd.f32 0.0, %v121
    %v123 = vpop.f32.mrb[0].mxu0
    %v124 = vpop.f32.mrb[0].mxu0
    %v125 = vpop.f32.mrb[0].mxu0
    %126 = vdwg.mxu0
    %v127 = vadd.f32 %v21, %v122
    %128 = vst [vmem:[#allocation2] sm:$0xff] %v127
    // Predicated region
    $region18: #{my_linear.1} parent=1 // pred_check
      %p129 = pneg %p16
    $region19: #{my_linear.1} parent=1 // pred_check_branch
      %131 = sbr.rel (%p129) target = $region21
    $region20: #{my_linear.1} parent=1 // pred_region
      %v132 = vld [vmem:[#allocation2] sm:$0xff]
      %v133 = vld [vmem:[%s2] sm:$0x1]
      %v135 = vlaneseq
      %v136 = vshrl.u32 %v135, 7
      %v137 = vsub.s32 0, %v136
      %v138 = vrot.slane %v133, %v137
      %v140 = vadd.f32 %v132, %v138
      %v141 = vmax.f32 %v140, 0.0
      %142 = vst [vmem:[#allocation2] sm:$0xff] %v141
    $region21: #{my_linear.1} parent=1 // pred_fallthru
      _
    // Predicated region
    $region22: #{my_linear.1} parent=1 // pred_check
      _
    $region23: #{my_linear.1} parent=1 // pred_check_branch
      %144 = sbr.rel (0) target = $region25
    $region24: #{my_linear.1} parent=1 // pred_region
      %s146 = ssub.s32 128, 128
      %147 = vsyncadd [#allocation3], %s146
      %s149 = sshll.u32 [#allocation2], 4
      %s150 = int_to_ptr.vmem [resolvable:$true] %s149
      %152 = dma.vmem_to_hbm [thread:$0]  %s150, 128, %s3, [#allocation3]
    $region25: #{my_linear.1} parent=1 // pred_fallthru
      _
    // Predicated region
    $region26: #{my_linear.1} parent=1 // pred_check
      _
    $region27: #{my_linear.1} parent=1 // pred_check_branch
      %154 = sbr.rel (0) target = $region29
    $region28: #{my_linear.1} parent=1 // pred_region
      %155 = dma.done [#allocation3], 128
    $region29: #{my_linear.1} parent=1 // pred_fallthru
      _
    %156 = vsyncpa [#allocation3], 1

</llo_original>
